<compile_context>
chip_gen: v7x
topology: tpu7x:2x2x1
jax: 0.10.0
libtpu: 0.0.40
codegen_flags: <defaults>
</compile_context>

<pallas_src>
import functools
import math

import jax
import jax.numpy as jnp
from jax.experimental import pallas as pl
from jax.experimental.pallas import tpu as pltpu

_LANE = 128                     # vreg lane count
_MAX_WIDTH = 8192               # cap on the lane-dense view width
_TARGET_BLOCK_BYTES = 2 << 20   # ~2 MiB blocks: wide DMAs, amortized step cost
_MIN_GRID_STEPS = 4             # pipelining depth / keeps both v7x TCs busy


def _sublane(itemsize: int) -> int:
    # Sublane packing multiple per dtype (f32: 8, bf16: 16, int8/fp8: 32).
    return {4: 8, 2: 16, 1: 32}.get(itemsize, 8)


def _activation_kernel(x_ref, o_ref, *, activation: str, alpha: float):
    x = x_ref[...]
    # f32 / bf16 are native VPU+EUP dtypes -> compute in place (no cast filler
    # ops).  Anything else (e.g. f16, ints) goes through f32.
    if x.dtype not in (jnp.float32, jnp.bfloat16):
        x = x.astype(jnp.float32)
    if activation == "elu":
        # torch.nn.ELU: x if x > 0 else alpha * expm1(x).
        # TODO(synk): use jnp.expm1 once its Mosaic lowering is guaranteed;
        # exp(x)-1 differs only by ~eps (absolute) for small negative x.
        neg = jnp.exp(x) - 1.0
        if alpha != 1.0:
            neg = alpha * neg
        y = jnp.where(x > 0, x, neg)
    elif activation == "relu":
        y = jnp.maximum(x, 0)
    elif activation == "leaky_relu":
        y = jnp.where(x > 0, x, alpha * x)
    else:
        raise ValueError(f"unsupported activation: {activation}")
    o_ref[...] = y.astype(o_ref.dtype)


def _choose_view(total: int, sub: int) -> tuple[int, int]:
    """Exact (rows, width) 2-D view of `total` elements (never pads/copies)."""
    # Preferred: width a multiple of 128 (lane-dense, unmasked stores); rank
    # candidates by row quality: full (sub,128) vregs > >=sub rows > any rows.
    for rows_ok in (lambda r: r % sub == 0,
                    lambda r: r >= sub,
                    lambda r: True):
        w = _MAX_WIDTH
        while w >= _LANE:
            if total % w == 0 and rows_ok(total // w):
                return total // w, w
            w -= _LANE
    # Ragged totals (no multiple-of-128 divisor): largest exact divisor as a
    # full trailing dim.  Stores may be lane-masked, but there is no pad/slice
    # round-trip, so HBM traffic stays at 1 read + 1 write per element.
    w = min(total, _MAX_WIDTH)
    while w >= _LANE:
        if total % w == 0:
            return total // w, w
        w -= 1
    # Last resort (tiny or near-prime totals): a single logical row; its lane
    # axis is tiled in 128-multiples with a masked tail block.
    return 1, total


def activation_layer(x, activation: str = "elu", alpha: float = 1.0):
    """Pallas equivalent of ActivationLayer(activation)(x); any input shape."""
    orig_shape = x.shape
    total = math.prod(orig_shape)
    if total == 0:
        return x
    itemsize = jnp.dtype(x.dtype).itemsize
    sub = _sublane(itemsize)

    rows, width = _choose_view(total, sub)
    x2d = x.reshape(rows, width)                       # exact reshape, no copy

    target_elems = max(_LANE, _TARGET_BLOCK_BYTES // itemsize)

    # Lane-axis block: full width in the common case.  Only the wide
    # single-row fallback can exceed _MAX_WIDTH; tile its lanes in
    # 128-multiples and let Pallas mask the ragged tail block.
    block_width = width if width <= _MAX_WIDTH else _MAX_WIDTH

    # Row-axis block: a multiple of the sublane packing sized to ~2 MiB, but
    # capped so the grid keeps >= _MIN_GRID_STEPS steps whenever rows permit
    # (DMA/compute overlap; on v7x the parallel grid is sharded over both TCs).
    row_budget = max(sub, (max(1, target_elems // block_width) // sub) * sub)
    steps = min(_MIN_GRID_STEPS, max(1, rows // sub))
    if steps > 1:
        row_budget = min(row_budget, max(sub, ((rows // steps) // sub) * sub))
    block_rows = min(rows, row_budget)

    grid = (pl.cdiv(rows, block_rows), pl.cdiv(width, block_width))

    # Explicit scoped-VMEM budget: in + out, double-buffered, plus headroom.
    padded_rows = pl.cdiv(block_rows, sub) * sub
    block_bytes = padded_rows * block_width * itemsize
    vmem_limit = int(min(32 << 20, max(16 << 20, 4 * block_bytes + (4 << 20))))

    flops = {"elu": 3, "relu": 1, "leaky_relu": 2}[activation] * total
    cost = pl.CostEstimate(
        flops=flops,
        transcendentals=total if activation == "elu" else 0,
        bytes_accessed=2 * total * itemsize,
    )

    kernel = functools.partial(_activation_kernel, activation=activation,
                               alpha=alpha)
    out2d = pl.pallas_call(
        kernel,
        out_shape=jax.ShapeDtypeStruct((rows, width), x.dtype),
        grid=grid,
        in_specs=[pl.BlockSpec((block_rows, block_width), lambda i, j: (i, j))],
        out_specs=pl.BlockSpec((block_rows, block_width), lambda i, j: (i, j)),
        compiler_params=pltpu.CompilerParams(
            dimension_semantics=("parallel", "parallel"),
            vmem_limit_bytes=vmem_limit),
        cost_estimate=cost,
    )(x2d)
    return out2d.reshape(orig_shape)


if __name__ == "__main__":
    key = jax.random.PRNGKey(0)

    # Small NCHW activation input consistent with a conv-net activation layer.
    x = jax.random.normal(key, (2, 4, 16, 16), dtype=jnp.float32)

    # ELU (DeepConvNet default).
    out = jax.block_until_ready(activation_layer(x, activation="elu", alpha=1.0))
    ref = jnp.where(x > 0, x, jnp.exp(x) - 1.0)
    assert out.shape == x.shape and out.dtype == x.dtype
    assert jnp.allclose(out, ref, atol=1e-6, rtol=1e-6)

    # ReLU / LeakyReLU variants.
    out_relu = jax.block_until_ready(activation_layer(x, activation="relu"))
    assert jnp.allclose(out_relu, jnp.maximum(x, 0.0), atol=1e-6, rtol=1e-6)

    out_lrelu = jax.block_until_ready(
        activation_layer(x, activation="leaky_relu", alpha=0.01))
    assert jnp.allclose(out_lrelu, jnp.where(x > 0, x, 0.01 * x),
                        atol=1e-6, rtol=1e-6)

    # Ragged element count: exercises the no-pad, full-trailing-dim path.
    y = jax.random.normal(jax.random.PRNGKey(1), (2, 3, 7, 5), dtype=jnp.float32)
    out_y = jax.block_until_ready(activation_layer(y, activation="elu"))
    assert out_y.shape == y.shape
    assert jnp.allclose(out_y, jnp.where(y > 0, y, jnp.exp(y) - 1.0),
                        atol=1e-6, rtol=1e-6)

    # bf16 input: computed natively in bf16 inside the kernel (no f32 casts).
    xb = x.astype(jnp.bfloat16)
    out_b = jax.block_until_ready(activation_layer(xb, activation="elu"))
    ref_b = jnp.where(xb > 0, xb, jnp.exp(xb) - 1.0)
    assert out_b.dtype == jnp.bfloat16
    assert jnp.allclose(out_b.astype(jnp.float32), ref_b.astype(jnp.float32),
                        atol=3e-2, rtol=3e-2)

    print("KERNEL_OK")
</pallas_src>

<mosaic_0001>
module attributes {stable_mosaic.version = 11 : i64} {
  func.func @_activation_kernel(%arg0: i32, %arg1: i32, %arg2: memref<8x256xf32, #tpu.memory_space<vmem>>, %arg3: memref<8x256xf32, #tpu.memory_space<vmem>>) attributes {dimension_semantics = [#tpu.dimension_semantics<parallel>, #tpu.dimension_semantics<parallel>], iteration_bounds = array<i64: 1, 1>, scalar_prefetch = 0 : i64, scratch_operands = 0 : i64, tpu.core_type = #tpu.core_type<tc>, window_params = [{transform_indices = @transform_0, window_bounds = array<i64: 8, 256>}, {transform_indices = @transform_1, window_bounds = array<i64: 8, 256>}]} {
    %c0 = arith.constant 0 : index
    %c0_0 = arith.constant 0 : index
    %0 = vector.load %arg2[%c0, %c0_0] : memref<8x256xf32, #tpu.memory_space<vmem>>, vector<8x256xf32>
    %1 = math.exp %0 : vector<8x256xf32>
    %cst = arith.constant 1.000000e+00 : f32
    %2 = vector.broadcast %cst : f32 to vector<8x256xf32>
    %3 = arith.subf %1, %2 : vector<8x256xf32>
    %cst_1 = arith.constant 0.000000e+00 : f32
    %4 = vector.broadcast %cst_1 : f32 to vector<8x256xf32>
    %5 = arith.cmpf ogt, %0, %4 : vector<8x256xf32>
    %6 = arith.select %5, %0, %3 : vector<8x256xi1>, vector<8x256xf32>
    %c0_2 = arith.constant 0 : index
    %c0_3 = arith.constant 0 : index
    %7 = vector.load %arg3[%c0_2, %c0_3] : memref<8x256xf32, #tpu.memory_space<vmem>>, vector<8x256xf32>
    tpu.vector_store %arg3[%c0_2, %c0_3], %6 {strides = array<i32>} : memref<8x256xf32, #tpu.memory_space<vmem>>, vector<8x256xf32>,
    return
  }
  func.func @transform_0(%arg0: i32, %arg1: i32) -> (i32, i32) {
    %c0_i32 = arith.constant 0 : i32
    return %arg0, %arg1 : i32, i32
  }
  func.func @transform_1(%arg0: i32, %arg1: i32) -> (i32, i32) {
    %c0_i32 = arith.constant 0 : i32
    return %arg0, %arg1 : i32, i32
  }
}

</mosaic_0001>

<llo_original>
// kernel: tpu_custom_call.1
$region0: #{tpu_custom_call.1}
  #allocation0 [shape = 'u32[]', space=smem, size = 0x4, offset = 0x4, fixed_abs, tag = 'smem constant byte address 0x4 - core index']
  #allocation1 [shape = 'u32[144,128]{1,0:T(1,128)}', space=vmem, size = 0x12000, scoped, tag = 'internal scratch']
  %s0 = inlined_call_operand.hbm [shape: f32[8,256], index: 0, kind: input, shape index: {}]
  %s1 = inlined_call_operand.hbm [shape: f32[8,256], index: 1, kind: output, shape index: {}]
  %s2 = sld [smem:[#allocation0]]
  $region18: #{tpu_custom_call.1} parent=0
    _
  %s4 = ssub.s32 1, %s2
  %s5 = scalar_select 0, %s4, %s2
  $region1: #{tpu_custom_call.1} parent=0
    #allocation2 [shape = 'u8[8192]{0}', space=vmem, size = 0x2000, scoped, tag = 'input window, operand 0, single buffered']
    #allocation3 [shape = 's32[1]{0}', space=sflag, size = 0x4, scoped, tag = 'scoped memory for tpu_custom_call.1']
    #allocation4 [shape = 's32[1]{0}', space=sflag, size = 0x4, scoped, tag = 'scoped memory for tpu_custom_call.1']
    #allocation5 [shape = 'u8[8192]{0}', space=vmem, size = 0x2000, scoped, tag = 'output window, operand 0, single buffered']
    %6 = vsyncpa [#allocation3], 0
    %7 = vsyncpa [#allocation4], 0
    // Predicated region
    $region2: #{tpu_custom_call.1} parent=1 // pred_check
      _
    $region3: #{tpu_custom_call.1} parent=1 // pred_check_branch
      %9 = sbr.rel (0) target = $region5
    $region4: #{tpu_custom_call.1} parent=1 // pred_region
      %s11 = ssub.s32 256, 256
      %12 = vsyncadd [#allocation3], %s11
      %s14 = sshll.u32 [#allocation2], 4
      %s15 = int_to_ptr.vmem [resolvable:$true] %s14
      %17 = dma.hbm_to_vmem [thread:$0]  %s0, 256, %s15, [#allocation3]
    $region5: #{tpu_custom_call.1} parent=1 // pred_fallthru
      _
    // Predicated region
    $region6: #{tpu_custom_call.1} parent=1 // pred_check
      _
    $region7: #{tpu_custom_call.1} parent=1 // pred_check_branch
      %19 = sbr.rel (0) target = $region9
    $region8: #{tpu_custom_call.1} parent=1 // pred_region
      %20 = dma.done [#allocation3], 256
    $region9: #{tpu_custom_call.1} parent=1 // pred_fallthru
      _
    %v21 = vld [vmem:[#allocation2] sm:$0xff]
    %v22 = vld [vmem:[#allocation2 + $0x8] sm:$0xff]
    %v23 = vmul.f32 %v21, 1.442695
    %v24 = vpow.pop %v23
    %v25 = vmul.f32 %v22, 1.442695
    %v26 = vpow.pop %v25
    %v27 = vsub.f32 %v24, 1.0
    %v28 = vsub.f32 %v26, 1.0
    %vm29 = vcmp.gt.f32.partialorder %v21, 0.0
    %vm30 = vcmp.gt.f32.partialorder %v22, 0.0
    %v31 = vsel %vm29, %v21, %v27
    %v32 = vsel %vm30, %v22, %v28
    %33 = vst [vmem:[#allocation5] sm:$0xff] %v31
    %34 = vst [vmem:[#allocation5 + $0x8] sm:$0xff] %v32
    // Predicated region
    $region10: #{tpu_custom_call.1} parent=1 // pred_check
      _
    $region11: #{tpu_custom_call.1} parent=1 // pred_check_branch
      %36 = sbr.rel (0) target = $region13
    $region12: #{tpu_custom_call.1} parent=1 // pred_region
      %s38 = ssub.s32 256, 256
      %39 = vsyncadd [#allocation4], %s38
      %s41 = sshll.u32 [#allocation5], 4
      %s42 = int_to_ptr.vmem [resolvable:$true] %s41
      %44 = dma.vmem_to_hbm [thread:$0]  %s42, 256, %s1, [#allocation4]
    $region13: #{tpu_custom_call.1} parent=1 // pred_fallthru
      _
    // Predicated region
    $region14: #{tpu_custom_call.1} parent=1 // pred_check
      _
    $region15: #{tpu_custom_call.1} parent=1 // pred_check_branch
      %46 = sbr.rel (0) target = $region17
    $region16: #{tpu_custom_call.1} parent=1 // pred_region
      %47 = dma.done [#allocation4], 256
    $region17: #{tpu_custom_call.1} parent=1 // pred_fallthru
      _
    %48 = vsyncpa [#allocation3], 1
    %49 = vsyncpa [#allocation4], 1

</llo_original>
